<compile_context>
chip_gen: v5e
topology: v5e:2x2
jax: 0.10.0
libtpu: 0.0.40
codegen_flags: <defaults>
</compile_context>

<pallas_src>
import functools

import jax
import jax.numpy as jnp
from jax.experimental import pallas as pl
from jax.experimental.pallas import tpu as pltpu


# ----------------------------- Pallas kernel ---------------------------------
def _make_kernel(N, Cout, S, TILE_S, eps=1e-5, neg_slope=0.2):
    inv_total = 1.0 / float(N * S)  # BN reduces over N*OH*OW elements per channel

    def kernel(patches_ref, w_ref, gamma_ref, beta_ref, out_ref,
               sum_ref, sumsq_ref):
        n = pl.program_id(0)   # batch index
        t = pl.program_id(1)   # spatial tile index

        # ---- phase-1 init: zero the per-channel stat accumulators -----------
        @pl.when(jnp.logical_and(n == 0, t == 0))
        def _init():
            sum_ref[...] = jnp.zeros_like(sum_ref)
            sumsq_ref[...] = jnp.zeros_like(sumsq_ref)

        # ---- conv tile on the MXU: (Cout, K)bf16 @ (K, TILE_S)bf16 -> f32 ----
        conv = jnp.dot(w_ref[...], patches_ref[0],
                       preferred_element_type=jnp.float32)      # (Cout, TILE_S)

        # Lane-dense store into the VMEM-resident output (spatial on lanes).
        r0 = pl.multiple_of(n * Cout, Cout)        # Cout=8 -> sublane aligned
        s0 = pl.multiple_of(t * TILE_S, TILE_S)    # 128-lane aligned
        out_ref[pl.ds(r0, Cout), pl.ds(s0, TILE_S)] = conv

        # Per-lane partial sums (pure VPU adds; lane reduce deferred to the end).
        sum_ref[...] += conv
        sumsq_ref[...] += conv * conv

        # ---- phase-2 finalize: folded BN affine + LeakyReLU, in VMEM ---------
        @pl.when(jnp.logical_and(n == pl.num_programs(0) - 1,
                                 t == pl.num_programs(1) - 1))
        def _finalize():
            ch_sum = jnp.sum(sum_ref[...], axis=1, keepdims=True)     # (Cout, 1)
            ch_sumsq = jnp.sum(sumsq_ref[...], axis=1, keepdims=True)  # (Cout, 1)
            mean = ch_sum * inv_total
            # E[x^2] - mean^2 in f32, clamped at 0 to guard cancellation.
            var = jnp.maximum(ch_sumsq * inv_total - mean * mean, 0.0)
            scale = gamma_ref[...] * jax.lax.rsqrt(var + eps)          # (Cout, 1)
            shift = beta_ref[...] - mean * scale                       # (Cout, 1)
            # Static unroll over batch rows (N is small); y = conv*scale + shift.
            for b in range(N):
                x = out_ref[b * Cout:(b + 1) * Cout, :]                # (Cout, S)
                y = x * scale + shift
                out_ref[b * Cout:(b + 1) * Cout, :] = jnp.maximum(y, neg_slope * y)

    return kernel


# ------------------------------ JAX wrapper -----------------------------------
@functools.partial(jax.jit, static_argnames=("kernel_size", "stride", "padding"))
def noise_encoder_forward(x_nchw, conv_weight, bn_gamma, bn_beta,
                          *, kernel_size, stride, padding):
    """x_nchw: (N, Cin, H, W); conv_weight: (Cout, Cin, kh, kw) (PyTorch layout)."""
    N, Cin, H, W = x_nchw.shape
    Cout = conv_weight.shape[0]
    kh = kw = kernel_size

    # im2col straight from NCHW (no activation transposes), transposed layout:
    # patches[n, k, s] with k = (i*kw + j)*Cin + c, s = oh*OW + ow.
    xp = jnp.pad(x_nchw, ((0, 0), (0, 0), (padding, padding), (padding, padding)))
    OH = (H + 2 * padding - kh) // stride + 1
    OW = (W + 2 * padding - kw) // stride + 1
    S = OH * OW
    K = kh * kw * Cin
    cols = []
    for i in range(kh):
        for j in range(kw):
            cols.append(xp[:, :, i:i + stride * OH:stride, j:j + stride * OW:stride])
    patches = jnp.stack(cols, axis=1)                # (N, kh*kw, Cin, OH, OW)
    patches = patches.reshape(N, K, S).astype(jnp.bfloat16)

    # PyTorch weight (Cout, Cin, kh, kw) -> (Cout, kh, kw, Cin) -> (Cout, K),
    # matching the K ordering above. bf16 for the MXU, f32 accumulation in-kernel.
    w_mat = jnp.transpose(conv_weight, (0, 2, 3, 1)).reshape(Cout, K).astype(jnp.bfloat16)

    gamma = bn_gamma.reshape(Cout, 1).astype(jnp.float32)
    beta = bn_beta.reshape(Cout, 1).astype(jnp.float32)

    TILE_S = 128 if S % 128 == 0 else S
    S_TILES = S // TILE_S

    kernel = _make_kernel(N, Cout, S, TILE_S)

    out_flat = pl.pallas_call(
        kernel,
        out_shape=jax.ShapeDtypeStruct((N * Cout, S), jnp.float32),
        grid=(N, S_TILES),
        in_specs=[
            pl.BlockSpec((1, K, TILE_S), lambda n, t: (n, 0, t)),   # patch tile
            pl.BlockSpec((Cout, K), lambda n, t: (0, 0)),           # weights (resident)
            pl.BlockSpec((Cout, 1), lambda n, t: (0, 0)),           # gamma
            pl.BlockSpec((Cout, 1), lambda n, t: (0, 0)),           # beta
        ],
        # Whole output stays resident in VMEM across the grid (written back once),
        # which is what lets the last grid step apply BN to every element.
        out_specs=pl.BlockSpec((N * Cout, S), lambda n, t: (0, 0)),
        scratch_shapes=[
            pltpu.VMEM((Cout, TILE_S), jnp.float32),   # per-lane channel sums
            pltpu.VMEM((Cout, TILE_S), jnp.float32),   # per-lane channel sum-of-squares
        ],
        compiler_params=pltpu.CompilerParams(
            dimension_semantics=("arbitrary", "arbitrary")),
    )(patches, w_mat, gamma, beta)

    # Rows are (n*Cout + c), lanes are (oh*OW + ow)  ->  direct NCHW reshape.
    return out_flat.reshape(N, Cout, OH, OW)


# ------------------------------- Reference ------------------------------------
def reference_forward(x_nchw, conv_weight, bn_gamma, bn_beta, *, stride, padding,
                      mxu_dtype=jnp.float32):
    conv = jax.lax.conv_general_dilated(
        x_nchw.astype(mxu_dtype), conv_weight.astype(mxu_dtype),
        window_strides=(stride, stride),
        padding=[(padding, padding), (padding, padding)],
        dimension_numbers=("NCHW", "OIHW", "NCHW"),
        preferred_element_type=jnp.float32)
    mean = jnp.mean(conv, axis=(0, 2, 3), keepdims=True)
    var = jnp.mean((conv - mean) ** 2, axis=(0, 2, 3), keepdims=True)
    xhat = (conv - mean) * jax.lax.rsqrt(var + 1e-5)
    y = xhat * bn_gamma.reshape(1, -1, 1, 1) + bn_beta.reshape(1, -1, 1, 1)
    return jnp.where(y >= 0, y, 0.2 * y)


# --------------------------------- Main ---------------------------------------
if __name__ == "__main__":
    # Module config (synthetic, deterministic init — no checkpoint load).
    channel_in, channel_out = 4, 8
    kernel_size, stride, padding = 3, 1, 1
    N, H, W = 2, 16, 16

    key = jax.random.PRNGKey(0)
    kx, kw_, kg, kb = jax.random.split(key, 4)

    x = jax.random.normal(kx, (N, channel_in, H, W), dtype=jnp.float32)
    conv_weight = 0.1 * jax.random.normal(
        kw_, (channel_out, channel_in, kernel_size, kernel_size), dtype=jnp.float32)
    bn_gamma = 1.0 + 0.1 * jax.random.normal(kg, (channel_out,), dtype=jnp.float32)
    bn_beta = 0.1 * jax.random.normal(kb, (channel_out,), dtype=jnp.float32)

    out = noise_encoder_forward(
        x, conv_weight, bn_gamma, bn_beta,
        kernel_size=kernel_size, stride=stride, padding=padding)
    out = jax.block_until_ready(out)
    assert out.shape == (N, channel_out, H, W), out.shape

    # Tight check vs a reference using the same bf16 MXU-operand quantization.
    ref_bf16 = reference_forward(x, conv_weight, bn_gamma, bn_beta,
                                 stride=stride, padding=padding,
                                 mxu_dtype=jnp.bfloat16)
    assert jnp.allclose(out, ref_bf16, atol=3e-3, rtol=3e-3), \
        "mismatch vs bf16-operand reference"

    # Loose sanity check vs the full-f32 PyTorch-equivalent forward (covers the
    # intentional bf16 operand cast on the conv).
    ref_f32 = reference_forward(x, conv_weight, bn_gamma, bn_beta,
                                stride=stride, padding=padding,
                                mxu_dtype=jnp.float32)
    assert jnp.allclose(out, ref_f32, atol=5e-2, rtol=5e-2), \
        "mismatch vs f32 reference"

    print("KERNEL_OK")
</pallas_src>

<mosaic_0001>
module attributes {stable_mosaic.version = 11 : i64} {
  func.func @kernel(%arg0: i32, %arg1: i32, %arg2: memref<1x36x128xbf16, #tpu.memory_space<vmem>>, %arg3: memref<8x36xbf16, #tpu.memory_space<vmem>>, %arg4: memref<8x1xf32, #tpu.memory_space<vmem>>, %arg5: memref<8x1xf32, #tpu.memory_space<vmem>>, %arg6: memref<16x256xf32, #tpu.memory_space<vmem>>, %arg7: memref<8x128xf32, #tpu.memory_space<vmem>>, %arg8: memref<8x128xf32, #tpu.memory_space<vmem>>) attributes {dimension_semantics = [#tpu.dimension_semantics<arbitrary>, #tpu.dimension_semantics<arbitrary>], iteration_bounds = array<i64: 2, 2>, scalar_prefetch = 0 : i64, scratch_operands = 2 : i64, tpu.core_type = #tpu.core_type<tc>, window_params = [{transform_indices = @transform_0, window_bounds = array<i64: 1, 36, 128>}, {pipeline_mode = #tpu.pipeline_mode<synchronous>, transform_indices = @transform_1, window_bounds = array<i64: 8, 36>}, {pipeline_mode = #tpu.pipeline_mode<synchronous>, transform_indices = @transform_2, window_bounds = array<i64: 8, 1>}, {pipeline_mode = #tpu.pipeline_mode<synchronous>, transform_indices = @transform_3, window_bounds = array<i64: 8, 1>}, {pipeline_mode = #tpu.pipeline_mode<synchronous>, transform_indices = @transform_4, window_bounds = array<i64: 16, 256>}]} {
    %c0_i32 = arith.constant 0 : i32
    %0 = arith.cmpi eq, %arg0, %c0_i32 : i32
    %c0_i32_0 = arith.constant 0 : i32
    %1 = arith.cmpi eq, %arg1, %c0_i32_0 : i32
    %2 = arith.andi %0, %1 : i1
    %3 = arith.extui %2 : i1 to i32
    %c0_i32_1 = arith.constant 0 : i32
    %4 = arith.cmpi ne, %3, %c0_i32_1 : i32
    scf.if %4 {
      %cst_16 = arith.constant 0.000000e+00 : f32
      %28 = vector.broadcast %cst_16 : f32 to vector<8x128xf32>
      %c0_17 = arith.constant 0 : index
      %c0_18 = arith.constant 0 : index
      %29 = vector.load %arg7[%c0_17, %c0_18] : memref<8x128xf32, #tpu.memory_space<vmem>>, vector<8x128xf32>
      tpu.vector_store %arg7[%c0_17, %c0_18], %28 {strides = array<i32>} : memref<8x128xf32, #tpu.memory_space<vmem>>, vector<8x128xf32>,
      %cst_19 = arith.constant 0.000000e+00 : f32
      %30 = vector.broadcast %cst_19 : f32 to vector<8x128xf32>
      %c0_20 = arith.constant 0 : index
      %c0_21 = arith.constant 0 : index
      %31 = vector.load %arg8[%c0_20, %c0_21] : memref<8x128xf32, #tpu.memory_space<vmem>>, vector<8x128xf32>
      tpu.vector_store %arg8[%c0_20, %c0_21], %30 {strides = array<i32>} : memref<8x128xf32, #tpu.memory_space<vmem>>, vector<8x128xf32>,
    } else {
    }
    %c0 = arith.constant 0 : index
    %c0_2 = arith.constant 0 : index
    %5 = vector.load %arg3[%c0, %c0_2] : memref<8x36xbf16, #tpu.memory_space<vmem>>, vector<8x36xbf16>
    %c0_3 = arith.constant 0 : index
    %c0_4 = arith.constant 0 : index
    %c0_5 = arith.constant 0 : index
    %6 = vector.load %arg2[%c0_3, %c0_4, %c0_5] : memref<1x36x128xbf16, #tpu.memory_space<vmem>>, vector<1x36x128xbf16>
    %7 = vector.shape_cast %6 : vector<1x36x128xbf16> to vector<36x128xbf16>
    %cst = arith.constant dense<0.000000e+00> : vector<8x128xf32>
    %8 = tpu.matmul %5, %7, %cst {dimension_numbers = #tpu.dot_dimension_numbers<[1], [0], [0], [1], [0, 0, 1, 1], [], []>} : vector<8x36xbf16>, vector<36x128xbf16>, vector<8x128xf32> -> vector<8x128xf32>
    %c8_i32 = arith.constant 8 : i32
    %9 = arith.muli %arg0, %c8_i32 : i32
    %10 = tpu.assume_multiple %9, 8 : i32
    %c128_i32 = arith.constant 128 : i32
    %11 = arith.muli %arg1, %c128_i32 : i32
    %12 = tpu.assume_multiple %11, 128 : i32
    %13 = arith.index_cast %10 : i32 to index
    %14 = arith.index_cast %12 : i32 to index
    %15 = vector.load %arg6[%13, %14] : memref<16x256xf32, #tpu.memory_space<vmem>>, vector<8x128xf32>
    tpu.vector_store %arg6[%13, %14], %8 {strides = array<i32>} : memref<16x256xf32, #tpu.memory_space<vmem>>, vector<8x128xf32>,
    %c0_6 = arith.constant 0 : index
    %c0_7 = arith.constant 0 : index
    %16 = vector.load %arg7[%c0_6, %c0_7] : memref<8x128xf32, #tpu.memory_space<vmem>>, vector<8x128xf32>
    %17 = arith.addf %16, %8 : vector<8x128xf32>
    %c0_8 = arith.constant 0 : index
    %c0_9 = arith.constant 0 : index
    %18 = vector.load %arg7[%c0_8, %c0_9] : memref<8x128xf32, #tpu.memory_space<vmem>>, vector<8x128xf32>
    tpu.vector_store %arg7[%c0_8, %c0_9], %17 {strides = array<i32>} : memref<8x128xf32, #tpu.memory_space<vmem>>, vector<8x128xf32>,
    %c0_10 = arith.constant 0 : index
    %c0_11 = arith.constant 0 : index
    %19 = vector.load %arg8[%c0_10, %c0_11] : memref<8x128xf32, #tpu.memory_space<vmem>>, vector<8x128xf32>
    %20 = arith.mulf %8, %8 : vector<8x128xf32>
    %21 = arith.addf %19, %20 : vector<8x128xf32>
    %c0_12 = arith.constant 0 : index
    %c0_13 = arith.constant 0 : index
    %22 = vector.load %arg8[%c0_12, %c0_13] : memref<8x128xf32, #tpu.memory_space<vmem>>, vector<8x128xf32>
    tpu.vector_store %arg8[%c0_12, %c0_13], %21 {strides = array<i32>} : memref<8x128xf32, #tpu.memory_space<vmem>>, vector<8x128xf32>,
    %c1_i32 = arith.constant 1 : i32
    %23 = arith.cmpi eq, %arg0, %c1_i32 : i32
    %c1_i32_14 = arith.constant 1 : i32
    %24 = arith.cmpi eq, %arg1, %c1_i32_14 : i32
    %25 = arith.andi %23, %24 : i1
    %26 = arith.extui %25 : i1 to i32
    %c0_i32_15 = arith.constant 0 : i32
    %27 = arith.cmpi ne, %26, %c0_i32_15 : i32
    scf.if %27 {
      %c0_16 = arith.constant 0 : index
      %c0_17 = arith.constant 0 : index
      %28 = vector.load %arg7[%c0_16, %c0_17] : memref<8x128xf32, #tpu.memory_space<vmem>>, vector<8x128xf32>
      %cst_18 = arith.constant dense<0.000000e+00> : vector<8xf32>
      %29 = vector.multi_reduction <add>, %28, %cst_18 [1] : vector<8x128xf32> to vector<8xf32>
      %30 = vector.shape_cast %29 : vector<8xf32> to vector<8x1xf32>
      %c0_19 = arith.constant 0 : index
      %c0_20 = arith.constant 0 : index
      %31 = vector.load %arg8[%c0_19, %c0_20] : memref<8x128xf32, #tpu.memory_space<vmem>>, vector<8x128xf32>
      %cst_21 = arith.constant dense<0.000000e+00> : vector<8xf32>
      %32 = vector.multi_reduction <add>, %31, %cst_21 [1] : vector<8x128xf32> to vector<8xf32>
      %33 = vector.shape_cast %32 : vector<8xf32> to vector<8x1xf32>
      %cst_22 = arith.constant 0.001953125 : f32
      %34 = vector.broadcast %cst_22 : f32 to vector<8x1xf32>
      %35 = arith.mulf %30, %34 : vector<8x1xf32>
      %cst_23 = arith.constant 0.001953125 : f32
      %36 = vector.broadcast %cst_23 : f32 to vector<8x1xf32>
      %37 = arith.mulf %33, %36 : vector<8x1xf32>
      %38 = arith.mulf %35, %35 : vector<8x1xf32>
      %39 = arith.subf %37, %38 : vector<8x1xf32>
      %cst_24 = arith.constant 0.000000e+00 : f32
      %40 = vector.broadcast %cst_24 : f32 to vector<8x1xf32>
      %41 = arith.maximumf %39, %40 : vector<8x1xf32>
      %c0_25 = arith.constant 0 : index
      %c0_26 = arith.constant 0 : index
      %42 = vector.load %arg4[%c0_25, %c0_26] : memref<8x1xf32, #tpu.memory_space<vmem>>, vector<8x1xf32>
      %cst_27 = arith.constant 9.99999974E-6 : f32
      %43 = vector.broadcast %cst_27 : f32 to vector<8x1xf32>
      %44 = arith.addf %41, %43 : vector<8x1xf32>
      %45 = math.rsqrt %44 : vector<8x1xf32>
      %46 = arith.mulf %42, %45 : vector<8x1xf32>
      %c0_28 = arith.constant 0 : index
      %c0_29 = arith.constant 0 : index
      %47 = vector.load %arg5[%c0_28, %c0_29] : memref<8x1xf32, #tpu.memory_space<vmem>>, vector<8x1xf32>
      %48 = arith.mulf %35, %46 : vector<8x1xf32>
      %49 = arith.subf %47, %48 : vector<8x1xf32>
      %c0_30 = arith.constant 0 : index
      %c0_31 = arith.constant 0 : index
      %50 = vector.load %arg6[%c0_30, %c0_31] : memref<16x256xf32, #tpu.memory_space<vmem>>, vector<8x256xf32>
      %51 = vector.broadcast %46 : vector<8x1xf32> to vector<8x256xf32>
      %52 = arith.mulf %50, %51 : vector<8x256xf32>
      %53 = vector.broadcast %49 : vector<8x1xf32> to vector<8x256xf32>
      %54 = arith.addf %52, %53 : vector<8x256xf32>
      %cst_32 = arith.constant 2.000000e-01 : f32
      %55 = vector.broadcast %cst_32 : f32 to vector<8x256xf32>
      %56 = arith.mulf %55, %54 : vector<8x256xf32>
      %57 = arith.maximumf %54, %56 : vector<8x256xf32>
      %c0_33 = arith.constant 0 : index
      %c0_34 = arith.constant 0 : index
      %58 = vector.load %arg6[%c0_33, %c0_34] : memref<16x256xf32, #tpu.memory_space<vmem>>, vector<8x256xf32>
      tpu.vector_store %arg6[%c0_33, %c0_34], %57 {strides = array<i32>} : memref<16x256xf32, #tpu.memory_space<vmem>>, vector<8x256xf32>,
      %c8 = arith.constant 8 : index
      %c0_35 = arith.constant 0 : index
      %59 = vector.load %arg6[%c8, %c0_35] : memref<16x256xf32, #tpu.memory_space<vmem>>, vector<8x256xf32>
      %60 = vector.broadcast %46 : vector<8x1xf32> to vector<8x256xf32>
      %61 = arith.mulf %59, %60 : vector<8x256xf32>
      %62 = vector.broadcast %49 : vector<8x1xf32> to vector<8x256xf32>
      %63 = arith.addf %61, %62 : vector<8x256xf32>
      %cst_36 = arith.constant 2.000000e-01 : f32
      %64 = vector.broadcast %cst_36 : f32 to vector<8x256xf32>
      %65 = arith.mulf %64, %63 : vector<8x256xf32>
      %66 = arith.maximumf %63, %65 : vector<8x256xf32>
      %c8_37 = arith.constant 8 : index
      %c0_38 = arith.constant 0 : index
      %67 = vector.load %arg6[%c8_37, %c0_38] : memref<16x256xf32, #tpu.memory_space<vmem>>, vector<8x256xf32>
      tpu.vector_store %arg6[%c8_37, %c0_38], %66 {strides = array<i32>} : memref<16x256xf32, #tpu.memory_space<vmem>>, vector<8x256xf32>,
    } else {
    }
    return
  }
  func.func @transform_0(%arg0: i32, %arg1: i32) -> (i32, i32, i32) {
    %c0_i32 = arith.constant 0 : i32
    %c0_i32_0 = arith.constant 0 : i32
    return %arg0, %c0_i32, %arg1 : i32, i32, i32
  }
  func.func @transform_1(%arg0: i32, %arg1: i32) -> (i32, i32) {
    %c0_i32 = arith.constant 0 : i32
    %c0_i32_0 = arith.constant 0 : i32
    %c0_i32_1 = arith.constant 0 : i32
    return %c0_i32, %c0_i32_0 : i32, i32
  }
  func.func @transform_2(%arg0: i32, %arg1: i32) -> (i32, i32) {
    %c0_i32 = arith.constant 0 : i32
    %c0_i32_0 = arith.constant 0 : i32
    %c0_i32_1 = arith.constant 0 : i32
    return %c0_i32, %c0_i32_0 : i32, i32
  }
  func.func @transform_3(%arg0: i32, %arg1: i32) -> (i32, i32) {
    %c0_i32 = arith.constant 0 : i32
    %c0_i32_0 = arith.constant 0 : i32
    %c0_i32_1 = arith.constant 0 : i32
    return %c0_i32, %c0_i32_0 : i32, i32
  }
  func.func @transform_4(%arg0: i32, %arg1: i32) -> (i32, i32) {
    %c0_i32 = arith.constant 0 : i32
    %c0_i32_0 = arith.constant 0 : i32
    %c0_i32_1 = arith.constant 0 : i32
    return %c0_i32, %c0_i32_0 : i32, i32
  }
}

</mosaic_0001>

<llo_original>
// kernel: noise_encoder_forward.1
$region0: #{noise_encoder_forward.1}
  #allocation0 [shape = 'u32[]', space=smem, size = 0x4, offset = 0x4, fixed_abs, tag = 'smem constant byte address 0x4 - core index']
  #allocation1 [shape = 'u32[72,128]{1,0:T(1,128)}', space=vmem, size = 0x9000, scoped, tag = 'internal scratch']
  #allocation2 [shape = 'f32[8,128]{1,0:T(8,128)}', space=vmem, size = 0x1000, scoped, tag = 'scratch operand']
  #allocation3 [shape = 'f32[8,128]{1,0:T(8,128)}', space=vmem, size = 0x1000, scoped, tag = 'scratch operand']
  %s0 = inlined_call_operand.vmem [shape: bf16[2,36,256], index: 0, kind: input, shape index: {}]
  %s1 = inlined_call_operand.vmem [shape: bf16[8,36], index: 1, kind: input, shape index: {}]
  %s2 = inlined_call_operand.vmem [shape: f32[8,1], index: 2, kind: input, shape index: {}]
  %s3 = inlined_call_operand.vmem [shape: f32[8,1], index: 3, kind: input, shape index: {}]
  %s4 = inlined_call_operand.vmem [shape: f32[16,256], index: 4, kind: output, shape index: {}]
  %s5 = sld [smem:[#allocation0]]
  $region98: #{noise_encoder_forward.1} parent=0
    _
  %s7 = ssub.s32 1, %s5
  %s8 = scalar_select 0, %s7, %s5
  $region1: #{noise_encoder_forward.1} parent=0
    #allocation4 [shape = 'u8[20480]{0}', space=vmem, size = 0x5000, scoped, tag = 'input window, operand 0']
    loop: start=0, step=1, limit=6
    $region2: #{noise_encoder_forward.1} parent=1 // loop_pre_header
      _
    $region3: #{noise_encoder_forward.1} parent=1 // loop_header
      %s10 = sphi 0, %s14
      %p11 = scmp.ge.s32.totalorder %s10, 6
      %s17 = sphi 0, %s29
      %s18 = sphi 0, %s25
      %s19 = sphi 0, %s17
      %s20 = sphi 0, %s18
      %s21 = sphi 0, %s19
      %s22 = sphi 0, %s20
      %s34 = sphi 0, %s36
      %s37 = sphi 0, %s34
      %s38 = sphi 0, %s37
      %s54 = sphi 0, %s38
      %s58 = sphi 0, %s58
      %s60 = sphi 0, %s58
      %s61 = sphi 0, %s60
      %s75 = sphi 0, %s61
      %s79 = sphi 0, %s79
      %s81 = sphi 0, %s79
      %s82 = sphi 0, %s81
      %s96 = sphi 0, %s82
      %s100 = sphi 0, %s100
      %s102 = sphi 0, %s100
      %s103 = sphi 0, %s102
      %s117 = sphi 0, %s103
      %s121 = sphi 0, %s121
      %s123 = sphi 0, %s121
      %s124 = sphi 0, %s123
      %s138 = sphi 0, %s124
    $region4: #{noise_encoder_forward.1} parent=1 // loop_header_branch
      %13 = sbr.rel (%p11) target = $region8
    $region5: #{noise_encoder_forward.1} parent=1 // loop_body
      %s15 = ssub.s32 %s10, 1
      %s16 = ssub.s32 %s10, 2
      %s23 = sadd.s32 1, %s18
      %p24 = scmp.ge.s32.totalorder %s23, 2
      %s25 = scalar_select %p24, 0, %s23
      %s26 = sadd.s32 1, %s17
      %s27 = scalar_select %p24, %s26, %s17
      %p28 = scmp.ge.s32.totalorder %s27, 2
      %s29 = scalar_select %p28, 0, %s27
      %s30 = ssub.s32 %s17, %s29
      %s31 = ssub.s32 %s18, %s25
      %s32 = sor.u32 %s30, %s31
      %p33 = scmp.eq.s32.totalorder %s32, 0
      %s35 = sadd.s32 %s34, 1
      %s36 = scalar_select %p33, %s34, %s35
      %p39 = pneg %p33
      %p40 = scmp.eq.s32.totalorder %s10, 3
      %p41 = por %p39, %p40
      %p42 = scmp.ne.s32.totalorder %s34, %s37
      %p43 = scmp.eq.s32.totalorder %s10, 0
      %p44 = por %p42, %p43
      %p45 = scmp.ne.s32.totalorder %s34, %s37
      %p46 = scmp.eq.s32.totalorder %s15, 3
      %p47 = por %p45, %p46
      %p48 = scmp.ne.s32.totalorder %s37, %s38
      %p49 = scmp.eq.s32.totalorder %s15, 0
      %p50 = por %p48, %p49
      %p51 = scmp.ne.s32.totalorder %s37, %s38
      %p52 = scmp.eq.s32.totalorder %s16, 3
      %p53 = por %p51, %p52
      %p55 = scmp.ne.s32.totalorder %s38, %s54
      %p56 = scmp.eq.s32.totalorder %s16, 0
      %p57 = por %p55, %p56
      %s59 = sadd.s32 %s58, 1
      %p62 = scmp.eq.s32.totalorder %s10, 3
      %p63 = scmp.ne.s32.totalorder %s58, %s60
      %p64 = scmp.eq.s32.totalorder %s10, 0
      %p65 = por %p63, %p64
      %p66 = scmp.ne.s32.totalorder %s58, %s60
      %p67 = scmp.eq.s32.totalorder %s15, 3
      %p68 = por %p66, %p67
      %p69 = scmp.ne.s32.totalorder %s60, %s61
      %p70 = scmp.eq.s32.totalorder %s15, 0
      %p71 = por %p69, %p70
      %p72 = scmp.ne.s32.totalorder %s60, %s61
      %p73 = scmp.eq.s32.totalorder %s16, 3
      %p74 = por %p72, %p73
      %p76 = scmp.ne.s32.totalorder %s61, %s75
      %p77 = scmp.eq.s32.totalorder %s16, 0
      %p78 = por %p76, %p77
      %s80 = sadd.s32 %s79, 1
      %p83 = scmp.eq.s32.totalorder %s10, 3
      %p84 = scmp.ne.s32.totalorder %s79, %s81
      %p85 = scmp.eq.s32.totalorder %s10, 0
      %p86 = por %p84, %p85
      %p87 = scmp.ne.s32.totalorder %s79, %s81
      %p88 = scmp.eq.s32.totalorder %s15, 3
      %p89 = por %p87, %p88
      %p90 = scmp.ne.s32.totalorder %s81, %s82
      %p91 = scmp.eq.s32.totalorder %s15, 0
      %p92 = por %p90, %p91
      %p93 = scmp.ne.s32.totalorder %s81, %s82
      %p94 = scmp.eq.s32.totalorder %s16, 3
      %p95 = por %p93, %p94
      %p97 = scmp.ne.s32.totalorder %s82, %s96
      %p98 = scmp.eq.s32.totalorder %s16, 0
      %p99 = por %p97, %p98
      %s101 = sadd.s32 %s100, 1
      %p104 = scmp.eq.s32.totalorder %s10, 3
      %p105 = scmp.ne.s32.totalorder %s100, %s102
      %p106 = scmp.eq.s32.totalorder %s10, 0
      %p107 = por %p105, %p106
      %p108 = scmp.ne.s32.totalorder %s100, %s102
      %p109 = scmp.eq.s32.totalorder %s15, 3
      %p110 = por %p108, %p109
      %p111 = scmp.ne.s32.totalorder %s102, %s103
      %p112 = scmp.eq.s32.totalorder %s15, 0
      %p113 = por %p111, %p112
      %p114 = scmp.ne.s32.totalorder %s102, %s103
      %p115 = scmp.eq.s32.totalorder %s16, 3
      %p116 = por %p114, %p115
      %p118 = scmp.ne.s32.totalorder %s103, %s117
      %p119 = scmp.eq.s32.totalorder %s16, 0
      %p120 = por %p118, %p119
      %s122 = sadd.s32 %s121, 1
      %p125 = scmp.eq.s32.totalorder %s10, 3
      %p126 = scmp.ne.s32.totalorder %s121, %s123
      %p127 = scmp.eq.s32.totalorder %s10, 0
      %p128 = por %p126, %p127
      %p129 = scmp.ne.s32.totalorder %s121, %s123
      %p130 = scmp.eq.s32.totalorder %s15, 3
      %p131 = por %p129, %p130
      %p132 = scmp.ne.s32.totalorder %s123, %s124
      %p133 = scmp.eq.s32.totalorder %s15, 0
      %p134 = por %p132, %p133
      %p135 = scmp.ne.s32.totalorder %s123, %s124
      %p136 = scmp.eq.s32.totalorder %s16, 3
      %p137 = por %p135, %p136
      %p139 = scmp.ne.s32.totalorder %s124, %s138
      %p140 = scmp.eq.s32.totalorder %s16, 0
      %p141 = por %p139, %p140
      %p142 = scmp.le.s32.totalorder 1, %s10
      %p143 = scmp.lt.s32.totalorder %s10, 5
      %p144 = pnand %p142, %p143
      %p145 = pneg %p144
      // Predicated region
      $region9: #{noise_encoder_forward.1} parent=5 // pred_check
        _
      $region10: #{noise_encoder_forward.1} parent=5 // pred_check_branch
        %147 = sbr.rel (%p144) target = $region12
      $region11: #{noise_encoder_forward.1} parent=5 // pred_region
        %s148 = ssub.s32 %s10, 1
        // Predicated region
        $region13: #{noise_encoder_forward.1} parent=11 // pred_check
          %p149 = pneg %p71
        $region14: #{noise_encoder_forward.1} parent=11 // pred_check_branch
          %151 = sbr.rel (%p149) target = $region16
        $region15: #{noise_encoder_forward.1} parent=11 // pred_region
          _
        $region16: #{noise_encoder_forward.1} parent=11 // pred_fallthru
          _
        // Predicated region
        $region17: #{noise_encoder_forward.1} parent=11 // pred_check
          %p152 = pneg %p92
        $region18: #{noise_encoder_forward.1} parent=11 // pred_check_branch
          %154 = sbr.rel (%p152) target = $region20
        $region19: #{noise_encoder_forward.1} parent=11 // pred_region
          _
        $region20: #{noise_encoder_forward.1} parent=11 // pred_fallthru
          _
        // Predicated region
        $region21: #{noise_encoder_forward.1} parent=11 // pred_check
          %p155 = pneg %p113
        $region22: #{noise_encoder_forward.1} parent=11 // pred_check_branch
          %157 = sbr.rel (%p155) target = $region24
        $region23: #{noise_encoder_forward.1} parent=11 // pred_region
          _
        $region24: #{noise_encoder_forward.1} parent=11 // pred_fallthru
          _
      $region12: #{noise_encoder_forward.1} parent=5 // pred_fallthru
        _
      %p158 = scmp.lt.s32.totalorder %s10, 4
      // Predicated region
      $region25: #{noise_encoder_forward.1} parent=5 // pred_check
        %p159 = pneg %p158
      $region26: #{noise_encoder_forward.1} parent=5 // pred_check_branch
        %161 = sbr.rel (%p159) target = $region28
      $region27: #{noise_encoder_forward.1} parent=5 // pred_region
        // Predicated region
        $region29: #{noise_encoder_forward.1} parent=27 // pred_check
          %p162 = pneg %p44
        $region30: #{noise_encoder_forward.1} parent=27 // pred_check_branch
          %164 = sbr.rel (%p162) target = $region32
        $region31: #{noise_encoder_forward.1} parent=27 // pred_region
          %s165 = sand.u32 %s34, 1
          %s166 = sand.u32 %s34, 1
          %s167 = smul.addr %s166, 20
          %s168 = scalar_lea.vmem [#allocation4], %s167
          %s169 = smul.addr %s17, 10
          %s170 = sadd.s32 %s18, %s169
          %s171 = smul.addr %s170, 4
          %s172 = scalar_lea.vmem %s0, %s171
          // Predicated region
          $region33: #{noise_encoder_forward.1} parent=31 // pred_check
            _
          $region34: #{noise_encoder_forward.1} parent=31 // pred_check_branch
            %174 = sbr.rel (0) target = $region36
          $region35: #{noise_encoder_forward.1} parent=31 // pred_region
            // Predicated region
            $region37: #{noise_encoder_forward.1} parent=35 // pred_check
              _
            $region38: #{noise_encoder_forward.1} parent=35 // pred_check_branch
              %176 = sbr.rel target = $region40
            $region39: #{noise_encoder_forward.1} parent=35 // pred_region
              // Predicated region
              $region52: #{noise_encoder_forward.1} parent=39 // pred_check
                _
              $region53: #{noise_encoder_forward.1} parent=39 // pred_check_branch
                %200 = sbr.rel (0) target = $region55
              $region54: #{noise_encoder_forward.1} parent=39 // pred_region
                loop: start=0, step=1, limit=1
                $region56: #{noise_encoder_forward.1} parent=54 // loop_pre_header
                  _
                $region57: #{noise_encoder_forward.1} parent=54 // loop_header
                  %s202 = sphi 0, %s206
                  %p203 = scmp.ge.s32.totalorder %s202, 1
                  %s207 = sphi %s172, %s172
                  %s208 = sphi %s168, %s168
                $region58: #{noise_encoder_forward.1} parent=54 // loop_header_branch
                  %205 = sbr.rel (%p203) target = $region62
                $region59: #{noise_encoder_forward.1} parent=54 // loop_body
                  _
                $region60: #{noise_encoder_forward.1} parent=54 // loop_footer
                  %s206 = sadd.s32 1, %s202
                $region61: #{noise_encoder_forward.1} parent=54 // loop_footer_branch
                  %201 = sbr.rel target = $region57
                $region62: #{noise_encoder_forward.1} parent=54 // loop_exit
                  _
                %s210 = ssub.s32 16, 1
                loop: start=0, step=1, limit=1
                $region63: #{noise_encoder_forward.1} parent=54 // loop_pre_header
                  _
                $region64: #{noise_encoder_forward.1} parent=54 // loop_header
                  %s212 = sphi 0, %s216
                  %p213 = scmp.ge.s32.totalorder %s212, 1
                  %s217 = sphi %s172, %s172
                  %s218 = sphi %s168, %s168
                $region65: #{noise_encoder_forward.1} parent=54 // loop_header_branch
                  %215 = sbr.rel (%p213) target = $region69
                $region66: #{noise_encoder_forward.1} parent=54 // loop_body
                  %v219 = vld [vmem:[%s217] sm:%s210]
                  %220 = vst [vmem:[%s218] sm:%s210] %v219
                  %v221 = vld [vmem:[%s217 + $0x8] sm:%s210]
                  %222 = vst [vmem:[%s218 + $0x4] sm:%s210] %v221
                  %v223 = vld [vmem:[%s217 + $0x10] sm:%s210]
                  %224 = vst [vmem:[%s218 + $0x8] sm:%s210] %v223
                  %v225 = vld [vmem:[%s217 + $0x18] sm:%s210]
                  %226 = vst [vmem:[%s218 + $0xc] sm:%s210] %v225
                  %v227 = vld [vmem:[%s217 + $0x20] sm:%s210]
                  %228 = vst [vmem:[%s218 + $0x10] sm:%s210] %v227
                $region67: #{noise_encoder_forward.1} parent=54 // loop_footer
                  %s216 = sadd.s32 1, %s212
                $region68: #{noise_encoder_forward.1} parent=54 // loop_footer_branch
                  %211 = sbr.rel target = $region64
                $region69: #{noise_encoder_forward.1} parent=54 // loop_exit
                  _
              $region55: #{noise_encoder_forward.1} parent=39 // pred_fallthru
                _
            $region40: #{noise_encoder_forward.1} parent=35 // pred_fallthru
              _
            // Predicated region
            $region41: #{noise_encoder_forward.1} parent=35 // pred_check
              _
            $region42: #{noise_encoder_forward.1} parent=35 // pred_check_branch
              %178 = sbr.rel (0) target = $region44
            $region43: #{noise_encoder_forward.1} parent=35 // pred_region
              %s180 = ssub.s32 16, 1
              loop: start=0, step=1, limit=1
              $region45: #{noise_encoder_forward.1} parent=43 // loop_pre_header
                _
              $region46: #{noise_encoder_forward.1} parent=43 // loop_header
                %s182 = sphi 0, %s186
                %p183 = scmp.ge.s32.totalorder %s182, 1
                %s187 = sphi %s172, %s172
                %s188 = sphi %s168, %s168
              $region47: #{noise_encoder_forward.1} parent=43 // loop_header_branch
                %185 = sbr.rel (%p183) target = $region51
              $region48: #{noise_encoder_forward.1} parent=43 // loop_body
                %v189 = vld [vmem:[%s187] sm:%s180]
                %190 = vst [vmem:[%s188] sm:%s180] %v189
                %v191 = vld [vmem:[%s187 + $0x8] sm:%s180]
                %192 = vst [vmem:[%s188 + $0x4] sm:%s180] %v191
                %v193 = vld [vmem:[%s187 + $0x10] sm:%s180]
                %194 = vst [vmem:[%s188 + $0x8] sm:%s180] %v193
                %v195 = vld [vmem:[%s187 + $0x18] sm:%s180]
                %196 = vst [vmem:[%s188 + $0xc] sm:%s180] %v195
                %v197 = vld [vmem:[%s187 + $0x20] sm:%s180]
                %198 = vst [vmem:[%s188 + $0x10] sm:%s180] %v197
              $region49: #{noise_encoder_forward.1} parent=43 // loop_footer
                %s186 = sadd.s32 1, %s182
              $region50: #{noise_encoder_forward.1} parent=43 // loop_footer_branch
                %181 = sbr.rel target = $region46
              $region51: #{noise_encoder_forward.1} parent=43 // loop_exit
                _
            $region44: #{noise_encoder_forward.1} parent=35 // pred_fallthru
              _
          $region36: #{noise_encoder_forward.1} parent=31 // pred_fallthru
            _
          %229 = vnop
        $region32: #{noise_encoder_forward.1} parent=27 // pred_fallthru
          _
      $region28: #{noise_encoder_forward.1} parent=5 // pred_fallthru
        _
      %p230 = scmp.le.s32.totalorder 1, %s10
      %p231 = scmp.lt.s32.totalorder %s10, 5
      %p232 = pnand %p230, %p231
      %p233 = pneg %p232
      // Predicated region
      $region70: #{noise_encoder_forward.1} parent=5 // pred_check
        _
      $region71: #{noise_encoder_forward.1} parent=5 // pred_check_branch
        %235 = sbr.rel (%p232) target = $region73
      $region72: #{noise_encoder_forward.1} parent=5 // pred_region
        %s236 = ssub.s32 %s10, 1
        %s237 = sand.u32 %s37, 1
        %s238 = sand.u32 %s37, 1
        %s239 = smul.addr %s238, 20
        %s240 = scalar_lea.vmem [#allocation4], %s239
        // Predicated region
        $region74: #{noise_encoder_forward.1} parent=72 // pred_check
          %p241 = pneg %p50
        $region75: #{noise_encoder_forward.1} parent=72 // pred_check_branch
          %243 = sbr.rel (%p241) target = $region77
        $region76: #{noise_encoder_forward.1} parent=72 // pred_region
          _
        $region77: #{noise_encoder_forward.1} parent=72 // pred_fallthru
          _
        %s244 = sand.u32 %s37, 1
        %s245 = sand.u32 %s37, 1
        %s246 = smul.addr %s245, 20
        %s247 = scalar_lea.vmem [#allocation4], %s246
        %p248 = pneg %p50
        %p249 = pneg %p47
        %p250 = pneg %p71
        %p251 = pneg %p68
        %p252 = pneg %p92
        %p253 = pneg %p89
        %p254 = pneg %p113
        %p255 = pneg %p110
        %p256 = pneg %p134
        %p257 = pneg %p131
        %p259 = scmp.eq.s32.totalorder %s19, 0
        %p260 = scmp.eq.s32.totalorder %s20, 0
        %p261 = pnand %p259, %p260
        %p262 = pneg %p261
        // Predicated region
        $region78: #{noise_encoder_forward.1} parent=72 // pred_check
          _
        $region79: #{noise_encoder_forward.1} parent=72 // pred_check_branch
          %264 = sbr.rel (%p261) target = $region81
        $region80: #{noise_encoder_forward.1} parent=72 // pred_region
          %265 = vst [vmem:[#allocation2] sm:$0xff] 0.0
          %266 = vst [vmem:[#allocation3] sm:$0xff] 0.0
        $region81: #{noise_encoder_forward.1} parent=72 // pred_fallthru
          _
        %v267 = vld [vmem:[%s1] sm:$0xf]
        %v268 = vld [vmem:[%s240] sm:$0xf]
        %v269 = vld [vmem:[%s240 + $0x4] sm:$0xf]
        %v270 = vld [vmem:[%s240 + $0x8] sm:$0xf]
        %v271 = vld [vmem:[%s240 + $0xc] sm:$0xf]
        %v272 = vld [vmem:[%s240 + $0x10] sm:$0x3]
        %v278 = vunpack.c.l.b16 %v268
        %v279 = vunpack.c.l.b16 %v269
        %v280 = vunpack.c.l.b16 %v270
        %v281 = vunpack.c.l.b16 %v271
        %v282 = vunpack.c.l.b16 %v272
        %v283 = vpack.c.b16 %v279, %v278
        %v284 = vpack.c.b16 %v281, %v280
        %v285 = vpack.c.b16 %v282, %v282
        %vm288 = vcmask 293888
        %v290 = vsel %vm288, %v267, 0
        %vm292 = vcmask 1041408
        %v294 = vsel %vm292, %v285, 0
        %296 = vmatpush.bf16.msra.mxu0 0
        %297 = vmatpush.bf16.msra.mxu0 0
        %298 = vmatpush.bf16.msra.mxu0 0
        %299 = vmatpush.bf16.msra.mxu0 0
        %300 = vmatpush.bf16.msra.mxu0 0
        %301 = vmatpush.bf16.msra.mxu0 %v294
        %302 = vmatpush.bf16.msra.mxu0 %v284
        %303 = vmatpush.bf16.msra.mxu0 %v283
        %304 = vmatmul.bf16.gmra.mxu0 %v290
        %v305 = vpop.f32.mrf.mxu0
        %v306 = vadd.f32 0.0, %v305
        %v307 = vpop.f32.mrf.mxu0
        %308 = vdwg.mxu0
        %s309 = smul.u32 %s19, 8
        %s310 = smul.u32 %s20, 128
        %s311 = sshra.s32 %s310, 7
        %s312 = sand.u32 %s310, 127
        %s313 = sshra.s32 %s309, 3
        %s314 = sand.u32 %s309, 7
        %s315 = smul.u32 %s313, 2
        %s316 = sadd.s32 %s311, %s315
        %s317 = smul.addr %s316, 8
        %s318 = scalar_lea.vmem %s4, %s317
        %319 = vst [vmem:[%s318] sm:$0xff] %v306
        %v320 = vld [vmem:[#allocation2] sm:$0xff]
        %v321 = vadd.f32 %v320, %v306
        %322 = vst [vmem:[#allocation2] sm:$0xff] %v321
        %v323 = vld [vmem:[#allocation3] sm:$0xff]
        %v324 = vmul.f32 %v306, %v306
        %v325 = vadd.f32 %v323, %v324
        %326 = vst [vmem:[#allocation3] sm:$0xff] %v325
        %p327 = scmp.eq.s32.totalorder %s19, 1
        %p328 = scmp.eq.s32.totalorder %s20, 1
        %p329 = pnand %p327, %p328
        %p330 = pneg %p329
        // Predicated region
        $region82: #{noise_encoder_forward.1} parent=72 // pred_check
          _
        $region83: #{noise_encoder_forward.1} parent=72 // pred_check_branch
          %332 = sbr.rel (%p329) target = $region85
        $region84: #{noise_encoder_forward.1} parent=72 // pred_region
          %v333 = vld [vmem:[#allocation2] sm:$0xff]
          %334 = vadd.xlane.f32.xlu0 %v333
          %v335 = vpop.xlane.xlu0 %334
          %v336 = vld [vmem:[#allocation3] sm:$0xff]
          %337 = vadd.xlane.f32.xlu0 %v336
          %v338 = vpop.xlane.xlu0 %337
          %v339 = vmul.f32 %v335, 0.001953125
          %v340 = vmul.f32 %v338, 0.001953125
          %v341 = vmul.f32 %v339, %v339
          %v342 = vsub.f32 %v340, %v341
          %v343 = vmax.f32 %v342, 0.0
          %v344 = vld [vmem:[%s2] sm:$0xff]
          %v345 = vadd.f32 %v343, 1e-05
          %v346 = vrsqrt.pop %v345
          %v347 = vmul.f32 %v346, %v345
          %v348 = vmul.f32 %v347, %v346
          %v349 = vmul.f32 0.5, %v348
          %v350 = vsub.f32 1.5, %v349
          %v351 = vmul.f32 %v346, %v350
          %vm352 = vweird.f32 %v345
          %vm353 = vweird.f32 %v346
          %vm354 = vmor %vm352, %vm353
          %v355 = vsel %vm354, %v346, %v351
          %v356 = vmul.f32 %v344, %v355
          %v357 = vld [vmem:[%s3] sm:$0xff]
          %v358 = vmul.f32 %v339, %v356
          %v359 = vsub.f32 %v357, %v358
          %v360 = vld [vmem:[%s4] sm:$0xff]
          %v361 = vld [vmem:[%s4 + $0x8] sm:$0xff]
          %363 = vset.pattern.permute.xlu0 0
          %364 = vperm.xlu0 %363, %v356
          %v365 = vpop.permute.xlu0 %364
          %v367 = vmul.f32 %v360, %v365
          %v368 = vmul.f32 %v361, %v365
          %370 = vset.pattern.permute.xlu0 0
          %371 = vperm.xlu0 %370, %v359
          %v372 = vpop.permute.xlu0 %371
          %v374 = vadd.f32 %v367, %v372
          %v375 = vadd.f32 %v368, %v372
          %v376 = vmul.f32 %v374, 0.2
          %v377 = vmul.f32 %v375, 0.2
          %v378 = vmax.f32 %v374, %v376
          %v379 = vmax.f32 %v375, %v377
          %380 = vst [vmem:[%s4] sm:$0xff] %v378
          %381 = vst [vmem:[%s4 + $0x8] sm:$0xff] %v379
          %v382 = vld [vmem:[%s4 + $0x10] sm:$0xff]
          %v383 = vld [vmem:[%s4 + $0x18] sm:$0xff]
          %v384 = vmul.f32 %v382, %v365
          %v385 = vmul.f32 %v383, %v365
          %v386 = vadd.f32 %v384, %v372
          %v387 = vadd.f32 %v385, %v372
          %v388 = vmul.f32 %v386, 0.2
          %v389 = vmul.f32 %v387, 0.2
          %v390 = vmax.f32 %v386, %v388
          %v391 = vmax.f32 %v387, %v389
          %392 = vst [vmem:[%s4 + $0x10] sm:$0xff] %v390
          %393 = vst [vmem:[%s4 + $0x18] sm:$0xff] %v391
        $region85: #{noise_encoder_forward.1} parent=72 // pred_fallthru
          _
        // Predicated region
        $region86: #{noise_encoder_forward.1} parent=72 // pred_check
          %p394 = pneg %p131
        $region87: #{noise_encoder_forward.1} parent=72 // pred_check_branch
          %396 = sbr.rel (%p394) target = $region89
        $region88: #{noise_encoder_forward.1} parent=72 // pred_region
          _
        $region89: #{noise_encoder_forward.1} parent=72 // pred_fallthru
          _
        // Predicated region
        $region90: #{noise_encoder_forward.1} parent=72 // pred_check
          %p397 = pneg %p131
        $region91: #{noise_encoder_forward.1} parent=72 // pred_check_branch
          %399 = sbr.rel (%p397) target = $region93
        $region92: #{noise_encoder_forward.1} parent=72 // pred_region
          _
        $region93: #{noise_encoder_forward.1} parent=72 // pred_fallthru
          _
      $region73: #{noise_encoder_forward.1} parent=5 // pred_fallthru
        _
      %p400 = scmp.le.s32.totalorder 2, %s10
      // Predicated region
      $region94: #{noise_encoder_forward.1} parent=5 // pred_check
        %p401 = pneg %p400
      $region95: #{noise_encoder_forward.1} parent=5 // pred_check_branch
        %403 = sbr.rel (%p401) target = $region97
      $region96: #{noise_encoder_forward.1} parent=5 // pred_region
        %s404 = ssub.s32 %s10, 2
      $region97: #{noise_encoder_forward.1} parent=5 // pred_fallthru
        _
    $region6: #{noise_encoder_forward.1} parent=1 // loop_footer
      %s14 = sadd.s32 1, %s10
    $region7: #{noise_encoder_forward.1} parent=1 // loop_footer_branch
      %9 = sbr.rel target = $region3
    $region8: #{noise_encoder_forward.1} parent=1 // loop_exit
      _

</llo_original>
